<compile_context>
chip_gen: v7x
topology: tpu7x:2x2x1
jax: 0.10.0
libtpu: 0.0.40
codegen_flags: <defaults>
</compile_context>

<pallas_src>
import functools

import numpy as np
import jax
import jax.numpy as jnp
from jax.experimental import pallas as pl
from jax.experimental.pallas import tpu as pltpu


def _istft_kernel(x_ref, c_ref, inv_env_ref, out_ref, *, n_out, hop, overlap):
    """One (batch, frame-tile) step: IDFT matmul + value-space overlap-add."""
    # x_ref: (Th, K) bf16 halo'd spectrogram tile, Th = n_out + overlap - 1.
    # c_ref: (K, n_fft) bf16 windowed ortho-IDFT basis. Single MXU pass with
    # f32 accumulation (no HIGHEST-precision multi-pass).
    frames = jnp.dot(x_ref[...], c_ref[...], preferred_element_type=jnp.float32)

    # Overlap-add + center trim in value space: output segment u is
    #   sum_m frames[u + m, chunk (overlap-1-m)],  m = 0..overlap-1,
    # where chunk j = samples [j*hop, (j+1)*hop) of a frame. Summing shifted
    # slices keeps the shifts off the store path and the result is written
    # exactly once as a lane-dense (n_out, hop) block.
    # TODO(synk): for hop not a multiple of 128 (e.g. DF n_fft=960/hop=480),
    # pad hop to a lane multiple to avoid masked stores / lane rotates.
    y = frames[0:n_out, (overlap - 1) * hop:overlap * hop]
    for m in range(1, overlap):                       # static, small (n_fft//hop)
        c0 = (overlap - 1 - m) * hop
        y = y + frames[m:m + n_out, c0:c0 + hop]

    out_ref[...] = (y * inv_env_ref[...]).astype(out_ref.dtype)


@functools.lru_cache(maxsize=8)
def _idft_basis_np(n_fft: int) -> np.ndarray:
    """(n_fft, n_fft) ortho inverse-rDFT basis: [cos rows k=0..N/2 ; -sin rows k=1..N/2-1]."""
    N = n_fft
    F = N // 2 + 1
    k = np.arange(F, dtype=np.float64)[:, None]
    n = np.arange(N, dtype=np.float64)[None, :]
    ang = 2.0 * np.pi * k * n / N
    amp = np.where((k == 0) | (k == N // 2), 1.0, 2.0) / np.sqrt(N)
    cos_rows = amp * np.cos(ang)                  # (F, N)
    sin_rows = (-amp * np.sin(ang))[1:F - 1]      # (F-2, N); k=0 and k=N/2 rows are all-zero
    return np.concatenate([cos_rows, sin_rows], axis=0).astype(np.float32)  # (N, N)


def istft(inp, window, n_fft: int, hop: int, *, max_frame_tile: int = 128):
    """Pallas implementation of Istft.forward.

    Args:
      inp:    (..., T, F) complex array, or (..., T, F, 2) real array holding
              the real/imag pair (what as_complex() would consume).
      window: (n_fft,) synthesis window (w_inv).
      n_fft, hop: ints. Requires F == n_fft//2 + 1, hop | n_fft and an even
              overlap factor n_fft//hop (true for the DeepFilterNet configs).
      max_frame_tile: output frames per grid step (VMEM tile size).
    Returns:
      (..., hop*T) float32 time-domain signal.
    """
    if jnp.iscomplexobj(inp):
        xr, xi = jnp.real(inp), jnp.imag(inp)
    else:
        assert inp.shape[-1] == 2, "expected trailing real/imag pair"
        xr, xi = inp[..., 0], inp[..., 1]

    *sh, T, F = xr.shape
    N = int(n_fft)
    assert F == N // 2 + 1, "onesided istft needs F == n_fft//2 + 1"
    assert N % hop == 0 and (N // hop) % 2 == 0, \
        "kernel assumes hop | n_fft and an even overlap factor"
    R = N // hop                      # overlap factor
    K = 2 * F - 2                     # == N: merged re/im contraction length

    xr = xr.reshape(-1, T, F)
    xi = xi.reshape(-1, T, F)
    B = xr.shape[0]
    w = window.astype(jnp.float32)

    # ---- constants: cached trig basis with the window folded in (bf16) -----
    basis = jnp.asarray(_idft_basis_np(N))                     # (K, N) f32
    c_mat = (basis * w[None, :]).astype(jnp.bfloat16)

    # Merged bf16 spectrogram [Re(k=0..N/2) | Im(k=1..N/2-1)] -> (B, T, K=N).
    # The dropped Im bins multiply all-zero sin rows, so this is exact.
    x_c = jnp.concatenate([xr, xi[..., 1:F - 1]], axis=-1).astype(jnp.bfloat16)

    # ---- frame-axis tiling with an (R-1)-frame halo duplicated in HBM ------
    Tt = T if T <= max_frame_tile else (max_frame_tile // 8) * 8   # 8-aligned
    n_t = -(-T // Tt)
    n_seg = n_t * Tt                                           # padded output segments
    Th = Tt + R - 1                                            # frames per grid step
    lead = R // 2 - 1                                          # zero frames before frame 0
    tot = n_seg + R - 1                                        # padded frame count
    x_pad = jnp.pad(x_c, ((0, 0), (lead, tot - lead - T), (0, 0)))
    halo_idx = np.arange(n_t, dtype=np.int32)[:, None] * Tt + \
        np.arange(Th, dtype=np.int32)[None, :]                 # (n_t, Th)
    x_tiles = x_pad[:, halo_idx, :]                            # (B, n_t, Th, K)

    # ---- reciprocal window-square envelope over T+1 frames (torch pads one
    # zero frame), NOLA-guarded, center-trimmed, tiled as (n_seg, hop) -------
    w2 = (w * w).reshape(R, hop)
    env = jnp.zeros((T + R, hop), jnp.float32)
    for j in range(R):                                         # static, small
        env = env.at[j:j + T + 1].add(w2[j])
    need = n_seg + R // 2
    if need > T + R:
        env = jnp.concatenate(
            [env, jnp.zeros((need - (T + R), hop), jnp.float32)], axis=0)
    env = env[R // 2:R // 2 + n_seg]
    inv_env = jnp.where(env > 1e-10, 1.0 / jnp.maximum(env, 1e-10), 0.0)

    # ---- explicit VMEM budget (default scoped limits are 16/32/32 MiB) -----
    try:
        vmem_cap = int(pltpu.get_tpu_info().vmem_capacity_bytes)
    except Exception:
        vmem_cap = 64 * 1024 * 1024                            # v7x-safe fallback
    est = (2 * Th * K * 2            # spectrogram tile (bf16, double buffered)
           + 2 * K * N * 2           # IDFT basis (bf16, double buffered)
           + 4 * Tt * hop * 4        # inv_env + output blocks (f32)
           + 4 * Th * N * 4)         # in-kernel f32 frame temporaries
    vmem_limit = int(min(3 * vmem_cap // 4, max(2 * est, 32 * 1024 * 1024)))

    out = pl.pallas_call(
        functools.partial(_istft_kernel, n_out=Tt, hop=hop, overlap=R),
        out_shape=jax.ShapeDtypeStruct((B, n_seg, hop), jnp.float32),
        grid=(B, n_t),
        in_specs=[
            pl.BlockSpec((None, None, Th, K), lambda b, t: (b, t, 0, 0)),
            # Grid-invariant basis.  TODO(synk): pipeline_mode=pl.Buffered(1)
            # would drop its second VMEM buffer once single-buffering is safe.
            pl.BlockSpec((K, N), lambda b, t: (0, 0)),
            pl.BlockSpec((Tt, hop), lambda b, t: (t, 0)),
        ],
        out_specs=pl.BlockSpec((None, Tt, hop), lambda b, t: (b, t, 0)),
        compiler_params=pltpu.CompilerParams(
            dimension_semantics=("parallel", "parallel"),
            vmem_limit_bytes=vmem_limit),
    )(x_tiles, c_mat, inv_env)

    out = out.reshape(B, n_seg * hop)[:, :T * hop]             # drop tile padding
    if len(sh) > 0:
        out = out.reshape(*sh, T * hop)
    return out


def _istft_ref(inp, window, n_fft, hop):
    """Pure-JAX reference mirroring torch.istft(normalized=True, center=True)."""
    xr, xi = inp[..., 0], inp[..., 1]
    *sh, T, F = xr.shape
    X = (xr + 1j * xi).reshape(-1, T, F)
    B = X.shape[0]
    X = jnp.concatenate([X, jnp.zeros((B, 1, F), X.dtype)], axis=1)  # pad frame
    frames = jnp.fft.irfft(X, n=n_fft, axis=-1, norm="ortho")
    frames = frames * window[None, None, :]
    T_pad = T + 1
    L_full = n_fft + hop * (T_pad - 1)
    y = jnp.zeros((B, L_full), jnp.float32)
    env = jnp.zeros((L_full,), jnp.float32)
    w2 = (window * window).astype(jnp.float32)
    for t in range(T_pad):
        y = y.at[:, t * hop:t * hop + n_fft].add(frames[:, t])
        env = env.at[t * hop:t * hop + n_fft].add(w2)
    start = n_fft // 2
    L_out = hop * T
    y = y[:, start:start + L_out] / env[None, start:start + L_out]
    return y.reshape(*sh, L_out) if sh else y


if __name__ == "__main__":
    # Small but representative shapes: n_fft=256, 50% overlap, 8 frames, batch 2.
    n_fft, hop = 256, 128
    B, T = 2, 8
    F = n_fft // 2 + 1

    key = jax.random.PRNGKey(0)
    # Realistic complex spectrogram: rfft of random frames, stored as (..., 2).
    sig = jax.random.normal(key, (B, T, n_fft), dtype=jnp.float32)
    spec = jnp.fft.rfft(sig, axis=-1, norm="ortho")                 # (B, T, F)
    inp = jnp.stack([jnp.real(spec), jnp.imag(spec)], axis=-1)      # (B, T, F, 2)

    # Periodic Hann synthesis window (== torch.hann_window(n_fft)).
    win = (0.5 - 0.5 * jnp.cos(2.0 * jnp.pi * jnp.arange(n_fft) / n_fft)
           ).astype(jnp.float32)

    out = istft(inp, win, n_fft, hop)
    out = jax.block_until_ready(out)

    ref = _istft_ref(inp, win, n_fft, hop)
    assert out.shape == (B, hop * T), out.shape
    # bf16 MXU inputs: expected error ~5e-3 RMS / ~2e-2 max on O(1) signals.
    max_err = float(jnp.max(jnp.abs(out - ref)))
    rel_rms = float(jnp.sqrt(jnp.mean((out - ref) ** 2) /
                             (jnp.mean(ref ** 2) + 1e-12)))
    assert max_err < 8e-2 and rel_rms < 2e-2, (max_err, rel_rms)

    print("KERNEL_OK")
</pallas_src>

<mosaic_0001>
module attributes {stable_mosaic.version = 11 : i64} {
  func.func @_istft_kernel(%arg0: i32, %arg1: i32, %arg2: memref<1x1x9x256xbf16, #tpu.memory_space<vmem>>, %arg3: memref<256x256xbf16, #tpu.memory_space<vmem>>, %arg4: memref<8x128xf32, #tpu.memory_space<vmem>>, %arg5: memref<1x8x128xf32, #tpu.memory_space<vmem>>) attributes {dimension_semantics = [#tpu.dimension_semantics<parallel>, #tpu.dimension_semantics<parallel>], iteration_bounds = array<i64: 2, 1>, scalar_prefetch = 0 : i64, scratch_operands = 0 : i64, tpu.core_type = #tpu.core_type<tc>, window_params = [{transform_indices = @transform_0, window_bounds = array<i64: 1, 1, 9, 256>}, {pipeline_mode = #tpu.pipeline_mode<synchronous>, transform_indices = @transform_1, window_bounds = array<i64: 256, 256>}, {transform_indices = @transform_2, window_bounds = array<i64: 8, 128>}, {transform_indices = @transform_3, window_bounds = array<i64: 1, 8, 128>}]} {
    %c0 = arith.constant 0 : index
    %c0_0 = arith.constant 0 : index
    %c0_1 = arith.constant 0 : index
    %c0_2 = arith.constant 0 : index
    %0 = vector.load %arg2[%c0, %c0_0, %c0_1, %c0_2] : memref<1x1x9x256xbf16, #tpu.memory_space<vmem>>, vector<1x1x9x256xbf16>
    %1 = vector.shape_cast %0 : vector<1x1x9x256xbf16> to vector<9x256xbf16>
    %c0_3 = arith.constant 0 : index
    %c0_4 = arith.constant 0 : index
    %2 = vector.load %arg3[%c0_3, %c0_4] : memref<256x256xbf16, #tpu.memory_space<vmem>>, vector<256x256xbf16>
    %cst = arith.constant dense<0.000000e+00> : vector<9x256xf32>
    %3 = tpu.matmul %1, %2, %cst {dimension_numbers = #tpu.dot_dimension_numbers<[1], [0], [0], [1], [0, 0, 1, 1], [], []>} : vector<9x256xbf16>, vector<256x256xbf16>, vector<9x256xf32> -> vector<9x256xf32>
    %4 = vector.extract_strided_slice %3 {offsets = [0, 128], sizes = [8, 128], strides = [1, 1]} : vector<9x256xf32> to vector<8x128xf32>
    %5 = vector.extract_strided_slice %3 {offsets = [1, 0], sizes = [8, 128], strides = [1, 1]} : vector<9x256xf32> to vector<8x128xf32>
    %6 = arith.addf %4, %5 : vector<8x128xf32>
    %c0_5 = arith.constant 0 : index
    %c0_6 = arith.constant 0 : index
    %7 = vector.load %arg4[%c0_5, %c0_6] : memref<8x128xf32, #tpu.memory_space<vmem>>, vector<8x128xf32>
    %8 = arith.mulf %6, %7 : vector<8x128xf32>
    %c0_7 = arith.constant 0 : index
    %c0_8 = arith.constant 0 : index
    %c0_9 = arith.constant 0 : index
    %9 = vector.load %arg5[%c0_7, %c0_8, %c0_9] : memref<1x8x128xf32, #tpu.memory_space<vmem>>, vector<1x8x128xf32>
    %10 = vector.shape_cast %9 : vector<1x8x128xf32> to vector<8x128xf32>
    %11 = vector.shape_cast %8 : vector<8x128xf32> to vector<1x8x128xf32>
    tpu.vector_store %arg5[%c0_7, %c0_8, %c0_9], %11 {strides = array<i32>} : memref<1x8x128xf32, #tpu.memory_space<vmem>>, vector<1x8x128xf32>,
    return
  }
  func.func @transform_0(%arg0: i32, %arg1: i32) -> (i32, i32, i32, i32) {
    %c0_i32 = arith.constant 0 : i32
    %c0_i32_0 = arith.constant 0 : i32
    %c0_i32_1 = arith.constant 0 : i32
    return %arg0, %arg1, %c0_i32, %c0_i32_0 : i32, i32, i32, i32
  }
  func.func @transform_1(%arg0: i32, %arg1: i32) -> (i32, i32) {
    %c0_i32 = arith.constant 0 : i32
    %c0_i32_0 = arith.constant 0 : i32
    %c0_i32_1 = arith.constant 0 : i32
    return %c0_i32, %c0_i32_0 : i32, i32
  }
  func.func @transform_2(%arg0: i32, %arg1: i32) -> (i32, i32) {
    %c0_i32 = arith.constant 0 : i32
    %c0_i32_0 = arith.constant 0 : i32
    return %arg1, %c0_i32 : i32, i32
  }
  func.func @transform_3(%arg0: i32, %arg1: i32) -> (i32, i32, i32) {
    %c0_i32 = arith.constant 0 : i32
    %c0_i32_0 = arith.constant 0 : i32
    return %arg0, %arg1, %c0_i32 : i32, i32, i32
  }
}

</mosaic_0001>

<llo_original>
// kernel: tpu_custom_call.1
$region0: #{tpu_custom_call.1}
  #allocation0 [shape = 'u32[]', space=smem, size = 0x4, offset = 0x4, fixed_abs, tag = 'smem constant byte address 0x4 - core index']
  #allocation1 [shape = 'u32[144,128]{1,0:T(1,128)}', space=vmem, size = 0x12000, scoped, tag = 'internal scratch']
  %s0 = inlined_call_operand.vmem [shape: bf16[2,1,9,256], index: 0, kind: input, shape index: {}]
  %s1 = inlined_call_operand.hbm [shape: bf16[256,256], index: 1, kind: input, shape index: {}]
  %s2 = inlined_call_operand.vmem [shape: f32[8,128], index: 2, kind: input, shape index: {}]
  %s3 = inlined_call_operand.hbm [shape: f32[2,8,128], index: 3, kind: output, shape index: {}]
  %s4 = sld [smem:[#allocation0]]
  $region49: #{tpu_custom_call.1} parent=0
    _
  %s6 = ssub.s32 1, %s4
  %s7 = scalar_select 0, %s6, %s4
  $region1: #{tpu_custom_call.1} parent=0
    #allocation2 [shape = 'u8[131072]{0}', space=vmem, size = 0x20000, scoped, tag = 'input window, operand 1, single buffered']
    #allocation3 [shape = 's32[2]{0}', space=sflag, size = 0x8, scoped, tag = 'scoped memory for tpu_custom_call.1']
    #allocation4 [shape = 's32[2]{0}', space=sflag, size = 0x8, scoped, tag = 'scoped memory for tpu_custom_call.1']
    #allocation5 [shape = 'u8[8192]{0}', space=vmem, size = 0x2000, scoped, tag = 'output window, operand 0']
    %8 = vsyncpa [#allocation3], 0
    %9 = vsyncpa [#allocation4], 0
    %s10 = scalar_lea.sflag [#allocation4], 1
    %11 = vsyncpa %s10, 0
    loop: start=0, step=1, limit=4
    $region2: #{tpu_custom_call.1} parent=1 // loop_pre_header
      _
    $region3: #{tpu_custom_call.1} parent=1 // loop_header
      %s13 = sphi 0, %s17
      %p14 = scmp.ge.s32.totalorder %s13, 4
      %s20 = sphi 0, %s32
      %s21 = sphi 0, %s28
      %s22 = sphi 0, %s20
      %s23 = sphi 0, %s21
      %s24 = sphi 0, %s22
      %s25 = sphi 0, %s23
      %s37 = sphi 0, %s39
      %s40 = sphi 0, %s37
      %s41 = sphi 0, %s40
      %s57 = sphi 0, %s41
      %s61 = sphi 0, %s61
      %s63 = sphi 0, %s61
      %s64 = sphi 0, %s63
      %s78 = sphi 0, %s64
      %s84 = sphi 0, %s86
      %s87 = sphi 0, %s84
      %s88 = sphi 0, %s87
      %s104 = sphi 0, %s88
      %s112 = sphi 0, %s114
      %s115 = sphi 0, %s112
      %s116 = sphi 0, %s115
      %s132 = sphi 0, %s116
    $region4: #{tpu_custom_call.1} parent=1 // loop_header_branch
      %16 = sbr.rel (%p14) target = $region8
    $region5: #{tpu_custom_call.1} parent=1 // loop_body
      %s18 = ssub.s32 %s13, 1
      %s19 = ssub.s32 %s13, 2
      %s26 = sadd.s32 1, %s21
      %p27 = scmp.ge.s32.totalorder %s26, 1
      %s28 = scalar_select %p27, 0, %s26
      %s29 = sadd.s32 1, %s20
      %s30 = scalar_select %p27, %s29, %s20
      %p31 = scmp.ge.s32.totalorder %s30, 2
      %s32 = scalar_select %p31, 0, %s30
      %s33 = ssub.s32 %s20, %s32
      %s34 = ssub.s32 %s21, %s28
      %s35 = sor.u32 %s33, %s34
      %p36 = scmp.eq.s32.totalorder %s35, 0
      %s38 = sadd.s32 %s37, 1
      %s39 = scalar_select %p36, %s37, %s38
      %p42 = pneg %p36
      %p43 = scmp.eq.s32.totalorder %s13, 1
      %p44 = por %p42, %p43
      %p45 = scmp.ne.s32.totalorder %s37, %s40
      %p46 = scmp.eq.s32.totalorder %s13, 0
      %p47 = por %p45, %p46
      %p48 = scmp.ne.s32.totalorder %s37, %s40
      %p49 = scmp.eq.s32.totalorder %s18, 1
      %p50 = por %p48, %p49
      %p51 = scmp.ne.s32.totalorder %s40, %s41
      %p52 = scmp.eq.s32.totalorder %s18, 0
      %p53 = por %p51, %p52
      %p54 = scmp.ne.s32.totalorder %s40, %s41
      %p55 = scmp.eq.s32.totalorder %s19, 1
      %p56 = por %p54, %p55
      %p58 = scmp.ne.s32.totalorder %s41, %s57
      %p59 = scmp.eq.s32.totalorder %s19, 0
      %p60 = por %p58, %p59
      %s62 = sadd.s32 %s61, 1
      %p65 = scmp.eq.s32.totalorder %s13, 1
      %p66 = scmp.ne.s32.totalorder %s61, %s63
      %p67 = scmp.eq.s32.totalorder %s13, 0
      %p68 = por %p66, %p67
      %p69 = scmp.ne.s32.totalorder %s61, %s63
      %p70 = scmp.eq.s32.totalorder %s18, 1
      %p71 = por %p69, %p70
      %p72 = scmp.ne.s32.totalorder %s63, %s64
      %p73 = scmp.eq.s32.totalorder %s18, 0
      %p74 = por %p72, %p73
      %p75 = scmp.ne.s32.totalorder %s63, %s64
      %p76 = scmp.eq.s32.totalorder %s19, 1
      %p77 = por %p75, %p76
      %p79 = scmp.ne.s32.totalorder %s64, %s78
      %p80 = scmp.eq.s32.totalorder %s19, 0
      %p81 = por %p79, %p80
      %s82 = ssub.s32 %s21, %s28
      %p83 = scmp.eq.s32.totalorder %s82, 0
      %s85 = sadd.s32 %s84, 1
      %s86 = scalar_select %p83, %s84, %s85
      %p89 = pneg %p83
      %p90 = scmp.eq.s32.totalorder %s13, 1
      %p91 = por %p89, %p90
      %p92 = scmp.ne.s32.totalorder %s84, %s87
      %p93 = scmp.eq.s32.totalorder %s13, 0
      %p94 = por %p92, %p93
      %p95 = scmp.ne.s32.totalorder %s84, %s87
      %p96 = scmp.eq.s32.totalorder %s18, 1
      %p97 = por %p95, %p96
      %p98 = scmp.ne.s32.totalorder %s87, %s88
      %p99 = scmp.eq.s32.totalorder %s18, 0
      %p100 = por %p98, %p99
      %p101 = scmp.ne.s32.totalorder %s87, %s88
      %p102 = scmp.eq.s32.totalorder %s19, 1
      %p103 = por %p101, %p102
      %p105 = scmp.ne.s32.totalorder %s88, %s104
      %p106 = scmp.eq.s32.totalorder %s19, 0
      %p107 = por %p105, %p106
      %s108 = ssub.s32 %s20, %s32
      %s109 = ssub.s32 %s21, %s28
      %s110 = sor.u32 %s108, %s109
      %p111 = scmp.eq.s32.totalorder %s110, 0
      %s113 = sadd.s32 %s112, 1
      %s114 = scalar_select %p111, %s112, %s113
      %p117 = pneg %p111
      %p118 = scmp.eq.s32.totalorder %s13, 1
      %p119 = por %p117, %p118
      %p120 = scmp.ne.s32.totalorder %s112, %s115
      %p121 = scmp.eq.s32.totalorder %s13, 0
      %p122 = por %p120, %p121
      %p123 = scmp.ne.s32.totalorder %s112, %s115
      %p124 = scmp.eq.s32.totalorder %s18, 1
      %p125 = por %p123, %p124
      %p126 = scmp.ne.s32.totalorder %s115, %s116
      %p127 = scmp.eq.s32.totalorder %s18, 0
      %p128 = por %p126, %p127
      %p129 = scmp.ne.s32.totalorder %s115, %s116
      %p130 = scmp.eq.s32.totalorder %s19, 1
      %p131 = por %p129, %p130
      %p133 = scmp.ne.s32.totalorder %s116, %s132
      %p134 = scmp.eq.s32.totalorder %s19, 0
      %p135 = por %p133, %p134
      %p136 = scmp.le.s32.totalorder 1, %s13
      %p137 = scmp.lt.s32.totalorder %s13, 3
      %p138 = pnand %p136, %p137
      %p139 = pneg %p138
      // Predicated region
      $region9: #{tpu_custom_call.1} parent=5 // pred_check
        _
      $region10: #{tpu_custom_call.1} parent=5 // pred_check_branch
        %141 = sbr.rel (%p138) target = $region12
      $region11: #{tpu_custom_call.1} parent=5 // pred_region
        %s142 = ssub.s32 %s13, 1
        // Predicated region
        $region13: #{tpu_custom_call.1} parent=11 // pred_check
          %p143 = pneg %p74
        $region14: #{tpu_custom_call.1} parent=11 // pred_check_branch
          %145 = sbr.rel (%p143) target = $region16
        $region15: #{tpu_custom_call.1} parent=11 // pred_region
          %s147 = ssub.s32 4096, 4096
          %148 = vsyncadd [#allocation3], %s147
          %s149 = sshll.u32 [#allocation2], 4
          %s150 = int_to_ptr.vmem [resolvable:$true] %s149
          %155 = dma.hbm_to_vmem [thread:$0]  %s1, 4096, %s150, [#allocation3], 128, 128, 8
        $region16: #{tpu_custom_call.1} parent=11 // pred_fallthru
          _
        // Predicated region
        $region17: #{tpu_custom_call.1} parent=11 // pred_check
          %p156 = pneg %p100
        $region18: #{tpu_custom_call.1} parent=11 // pred_check_branch
          %158 = sbr.rel (%p156) target = $region20
        $region19: #{tpu_custom_call.1} parent=11 // pred_region
          %p159 = scmp.lt.s32.totalorder %s23, 0
          %s160 = scalar_select %p159, %s23, 0
          %s161 = smul.addr %s160, 8
          %s162 = scalar_lea.vmem %s2, %s161
        $region20: #{tpu_custom_call.1} parent=11 // pred_fallthru
          _
      $region12: #{tpu_custom_call.1} parent=5 // pred_fallthru
        _
      %p163 = scmp.lt.s32.totalorder %s13, 2
      // Predicated region
      $region21: #{tpu_custom_call.1} parent=5 // pred_check
        %p164 = pneg %p163
      $region22: #{tpu_custom_call.1} parent=5 // pred_check_branch
        %166 = sbr.rel (%p164) target = $region24
      $region23: #{tpu_custom_call.1} parent=5 // pred_region
        // Predicated region
        $region25: #{tpu_custom_call.1} parent=23 // pred_check
          %p167 = pneg %p47
        $region26: #{tpu_custom_call.1} parent=23 // pred_check_branch
          %169 = sbr.rel (%p167) target = $region28
        $region27: #{tpu_custom_call.1} parent=23 // pred_region
          %p170 = scmp.lt.s32.totalorder %s20, 1
          %s171 = scalar_select %p170, %s20, 1
          %p172 = scmp.lt.s32.totalorder %s21, 0
          %s173 = scalar_select %p172, %s21, 0
          %s174 = smul.addr %s173, 4
          %s175 = smul.addr %s171, 4
          %s176 = sadd.s32 %s174, %s175
          %s177 = smul.addr %s176, 4
          %s178 = scalar_lea.vmem %s0, %s177
        $region28: #{tpu_custom_call.1} parent=23 // pred_fallthru
          _
      $region24: #{tpu_custom_call.1} parent=5 // pred_fallthru
        _
      %p179 = scmp.le.s32.totalorder 1, %s13
      %p180 = scmp.lt.s32.totalorder %s13, 3
      %p181 = pnand %p179, %p180
      %p182 = pneg %p181
      // Predicated region
      $region29: #{tpu_custom_call.1} parent=5 // pred_check
        _
      $region30: #{tpu_custom_call.1} parent=5 // pred_check_branch
        %184 = sbr.rel (%p181) target = $region32
      $region31: #{tpu_custom_call.1} parent=5 // pred_region
        %s185 = ssub.s32 %s13, 1
        // Predicated region
        $region33: #{tpu_custom_call.1} parent=31 // pred_check
          %p186 = pneg %p74
        $region34: #{tpu_custom_call.1} parent=31 // pred_check_branch
          %188 = sbr.rel (%p186) target = $region36
        $region35: #{tpu_custom_call.1} parent=31 // pred_region
          %189 = dma.done [#allocation3], 4096
        $region36: #{tpu_custom_call.1} parent=31 // pred_fallthru
          _
        %p190 = scmp.lt.s32.totalorder %s22, 1
        %s191 = scalar_select %p190, %s22, 1
        %p192 = scmp.lt.s32.totalorder %s23, 0
        %s193 = scalar_select %p192, %s23, 0
        %s194 = smul.addr %s193, 4
        %s195 = smul.addr %s191, 4
        %s196 = sadd.s32 %s194, %s195
        %s197 = smul.addr %s196, 4
        %s198 = scalar_lea.vmem %s0, %s197
        %p199 = pneg %p53
        %p200 = pneg %p50
        %p201 = pneg %p74
        %p202 = pneg %p71
        %p203 = scmp.lt.s32.totalorder %s23, 0
        %s204 = scalar_select %p203, %s23, 0
        %s205 = smul.addr %s204, 8
        %s206 = scalar_lea.vmem %s2, %s205
        %p207 = pneg %p100
        %p208 = pneg %p97
        %p209 = pneg %p128
        %p210 = pneg %p125
        %s211 = sand.u32 %s115, 1
        %s212 = scalar_lea.sflag [#allocation4], %s211
        %s213 = sand.u32 %s115, 1
        %s214 = smul.addr %s213, 8
        %s215 = scalar_lea.vmem [#allocation5], %s214
        %p216 = scmp.lt.s32.totalorder %s22, 1
        %s217 = scalar_select %p216, %s22, 1
        %p218 = scmp.lt.s32.totalorder %s23, 0
        %s219 = scalar_select %p218, %s23, 0
        %s220 = smul.addr %s219, 4
        %s221 = smul.addr %s217, 4
        %s222 = sadd.s32 %s220, %s221
        %s223 = smul.addr %s222, 4
        %s224 = scalar_lea.vmem %s0, %s223
        %p225 = scmp.lt.s32.totalorder %s23, 0
        %s226 = scalar_select %p225, %s23, 0
        %s227 = smul.addr %s226, 8
        %s228 = scalar_lea.vmem %s2, %s227
        %v229 = vld [vmem:[%s224] sm:$0xff]
        %v230 = vld [vmem:[%s224 + $0x8] sm:$0x11]
        %v231 = vld [vmem:[#allocation2] sm:$0xff]
        %v232 = vld [vmem:[#allocation2 + $0x8] sm:$0xff]
        %v233 = vld [vmem:[#allocation2 + $0x10] sm:$0xff]
        %v234 = vld [vmem:[#allocation2 + $0x18] sm:$0xff]
        %v235 = vld [vmem:[#allocation2 + $0x20] sm:$0xff]
        %v236 = vld [vmem:[#allocation2 + $0x28] sm:$0xff]
        %v237 = vld [vmem:[#allocation2 + $0x30] sm:$0xff]
        %v238 = vld [vmem:[#allocation2 + $0x38] sm:$0xff]
        %v239 = vld [vmem:[#allocation2 + $0x40] sm:$0xff]
        %v240 = vld [vmem:[#allocation2 + $0x48] sm:$0xff]
        %v241 = vld [vmem:[#allocation2 + $0x50] sm:$0xff]
        %v242 = vld [vmem:[#allocation2 + $0x58] sm:$0xff]
        %v243 = vld [vmem:[#allocation2 + $0x60] sm:$0xff]
        %v244 = vld [vmem:[#allocation2 + $0x68] sm:$0xff]
        %v245 = vld [vmem:[#allocation2 + $0x70] sm:$0xff]
        %v246 = vld [vmem:[#allocation2 + $0x78] sm:$0xff]
        %v247 = vld [vmem:[#allocation2 + $0x80] sm:$0xff]
        %v248 = vld [vmem:[#allocation2 + $0x88] sm:$0xff]
        %v249 = vld [vmem:[#allocation2 + $0x90] sm:$0xff]
        %v250 = vld [vmem:[#allocation2 + $0x98] sm:$0xff]
        %v251 = vld [vmem:[#allocation2 + $0xa0] sm:$0xff]
        %v252 = vld [vmem:[#allocation2 + $0xa8] sm:$0xff]
        %v253 = vld [vmem:[#allocation2 + $0xb0] sm:$0xff]
        %v254 = vld [vmem:[#allocation2 + $0xb8] sm:$0xff]
        %v255 = vld [vmem:[#allocation2 + $0xc0] sm:$0xff]
        %v256 = vld [vmem:[#allocation2 + $0xc8] sm:$0xff]
        %v257 = vld [vmem:[#allocation2 + $0xd0] sm:$0xff]
        %v258 = vld [vmem:[#allocation2 + $0xd8] sm:$0xff]
        %v259 = vld [vmem:[#allocation2 + $0xe0] sm:$0xff]
        %v260 = vld [vmem:[#allocation2 + $0xe8] sm:$0xff]
        %v261 = vld [vmem:[#allocation2 + $0xf0] sm:$0xff]
        %v262 = vld [vmem:[#allocation2 + $0xf8] sm:$0xff]
        %v265 = vunpack.c.l.b16 %v229
        %v266 = vunpack.c.h.b16 %v229
        %v267 = vunpack.c.l.b16 %v230
        %v268 = vunpack.c.h.b16 %v230
        %v269 = vpack.c.b16 %v267, %v265
        %v270 = vpack.c.b16 %v268, %v266
        %v305 = vunpack.c.l.b16 %v231
        %v306 = vunpack.c.h.b16 %v231
        %v307 = vunpack.c.l.b16 %v232
        %v308 = vunpack.c.h.b16 %v232
        %v309 = vunpack.c.l.b16 %v233
        %v310 = vunpack.c.h.b16 %v233
        %v311 = vunpack.c.l.b16 %v234
        %v312 = vunpack.c.h.b16 %v234
        %v313 = vunpack.c.l.b16 %v235
        %v314 = vunpack.c.h.b16 %v235
        %v315 = vunpack.c.l.b16 %v236
        %v316 = vunpack.c.h.b16 %v236
        %v317 = vunpack.c.l.b16 %v237
        %v318 = vunpack.c.h.b16 %v237
        %v319 = vunpack.c.l.b16 %v238
        %v320 = vunpack.c.h.b16 %v238
        %v321 = vunpack.c.l.b16 %v239
        %v322 = vunpack.c.h.b16 %v239
        %v323 = vunpack.c.l.b16 %v240
        %v324 = vunpack.c.h.b16 %v240
        %v325 = vunpack.c.l.b16 %v241
        %v326 = vunpack.c.h.b16 %v241
        %v327 = vunpack.c.l.b16 %v242
        %v328 = vunpack.c.h.b16 %v242
        %v329 = vunpack.c.l.b16 %v243
        %v330 = vunpack.c.h.b16 %v243
        %v331 = vunpack.c.l.b16 %v244
        %v332 = vunpack.c.h.b16 %v244
        %v333 = vunpack.c.l.b16 %v245
        %v334 = vunpack.c.h.b16 %v245
        %v335 = vunpack.c.l.b16 %v246
        %v336 = vunpack.c.h.b16 %v246
        %v337 = vunpack.c.l.b16 %v247
        %v338 = vunpack.c.h.b16 %v247
        %v339 = vunpack.c.l.b16 %v248
        %v340 = vunpack.c.h.b16 %v248
        %v341 = vunpack.c.l.b16 %v249
        %v342 = vunpack.c.h.b16 %v249
        %v343 = vunpack.c.l.b16 %v250
        %v344 = vunpack.c.h.b16 %v250
        %v345 = vunpack.c.l.b16 %v251
        %v346 = vunpack.c.h.b16 %v251
        %v347 = vunpack.c.l.b16 %v252
        %v348 = vunpack.c.h.b16 %v252
        %v349 = vunpack.c.l.b16 %v253
        %v350 = vunpack.c.h.b16 %v253
        %v351 = vunpack.c.l.b16 %v254
        %v352 = vunpack.c.h.b16 %v254
        %v353 = vunpack.c.l.b16 %v255
        %v354 = vunpack.c.h.b16 %v255
        %v355 = vunpack.c.l.b16 %v256
        %v356 = vunpack.c.h.b16 %v256
        %v357 = vunpack.c.l.b16 %v257
        %v358 = vunpack.c.h.b16 %v257
        %v359 = vunpack.c.l.b16 %v258
        %v360 = vunpack.c.h.b16 %v258
        %v361 = vunpack.c.l.b16 %v259
        %v362 = vunpack.c.h.b16 %v259
        %v363 = vunpack.c.l.b16 %v260
        %v364 = vunpack.c.h.b16 %v260
        %v365 = vunpack.c.l.b16 %v261
        %v366 = vunpack.c.h.b16 %v261
        %v367 = vunpack.c.l.b16 %v262
        %v368 = vunpack.c.h.b16 %v262
        %v369 = vpack.c.b16 %v307, %v305
        %v370 = vpack.c.b16 %v308, %v306
        %v371 = vpack.c.b16 %v311, %v309
        %v372 = vpack.c.b16 %v312, %v310
        %v373 = vpack.c.b16 %v315, %v313
        %v374 = vpack.c.b16 %v316, %v314
        %v375 = vpack.c.b16 %v319, %v317
        %v376 = vpack.c.b16 %v320, %v318
        %v377 = vpack.c.b16 %v323, %v321
        %v378 = vpack.c.b16 %v324, %v322
        %v379 = vpack.c.b16 %v327, %v325
        %v380 = vpack.c.b16 %v328, %v326
        %v381 = vpack.c.b16 %v331, %v329
        %v382 = vpack.c.b16 %v332, %v330
        %v383 = vpack.c.b16 %v335, %v333
        %v384 = vpack.c.b16 %v336, %v334
        %v385 = vpack.c.b16 %v339, %v337
        %v386 = vpack.c.b16 %v340, %v338
        %v387 = vpack.c.b16 %v343, %v341
        %v388 = vpack.c.b16 %v344, %v342
        %v389 = vpack.c.b16 %v347, %v345
        %v390 = vpack.c.b16 %v348, %v346
        %v391 = vpack.c.b16 %v351, %v349
        %v392 = vpack.c.b16 %v352, %v350
        %v393 = vpack.c.b16 %v355, %v353
        %v394 = vpack.c.b16 %v356, %v354
        %v395 = vpack.c.b16 %v359, %v357
        %v396 = vpack.c.b16 %v360, %v358
        %v397 = vpack.c.b16 %v363, %v361
        %v398 = vpack.c.b16 %v364, %v362
        %v399 = vpack.c.b16 %v367, %v365
        %v400 = vpack.c.b16 %v368, %v366
        %433 = vmatprep.subr.bf16.mxu0 %v370
        %434 = vmatpush1.bf16.msra.mxu0 %v369
        %435 = vmatprep.subr.bf16.mxu0 %v372
        %436 = vmatpush1.bf16.msra.mxu0 %v371
        %437 = vmatprep.subr.bf16.mxu0 %v374
        %438 = vmatpush1.bf16.msra.mxu0 %v373
        %439 = vmatprep.subr.bf16.mxu0 %v376
        %440 = vmatpush1.bf16.msra.mxu0 %v375
        %441 = vmatprep.subr.bf16.mxu0 %v378
        %442 = vmatpush1.bf16.msra.mxu0 %v377
        %443 = vmatprep.subr.bf16.mxu0 %v380
        %444 = vmatpush1.bf16.msra.mxu0 %v379
        %445 = vmatprep.subr.bf16.mxu0 %v382
        %446 = vmatpush1.bf16.msra.mxu0 %v381
        %447 = vmatprep.subr.bf16.mxu0 %v384
        %448 = vmatpush1.bf16.msra.mxu0 %v383
        %449 = vmatprep.subr.bf16.mxu0 %v386
        %450 = vmatpush1.bf16.msra.mxu0 %v385
        %451 = vmatprep.subr.bf16.mxu0 %v388
        %452 = vmatpush1.bf16.msra.mxu0 %v387
        %453 = vmatprep.subr.bf16.mxu0 %v390
        %454 = vmatpush1.bf16.msra.mxu0 %v389
        %455 = vmatprep.subr.bf16.mxu0 %v392
        %456 = vmatpush1.bf16.msra.mxu0 %v391
        %457 = vmatprep.subr.bf16.mxu0 %v394
        %458 = vmatpush1.bf16.msra.mxu0 %v393
        %459 = vmatprep.subr.bf16.mxu0 %v396
        %460 = vmatpush1.bf16.msra.mxu0 %v395
        %461 = vmatprep.subr.bf16.mxu0 %v398
        %462 = vmatpush1.bf16.msra.mxu0 %v397
        %463 = vmatprep.subr.bf16.mxu0 %v400
        %464 = vmatpush1.bf16.msra.mxu0 %v399
        %465 = vmatprep.mubr.bf16.mxu0 %v270
        %466 = vmatmul.mubr.bf16.gmra.mrb[0].mxu0 %v269
        %v467 = vpop.f32.mrb[0].mxu0
        %v468 = vadd.f32 0.0, %v467
        %v469 = vpop.f32.mrb[0].mxu0
        %v470 = vadd.f32 0.0, %v469
        %v471 = vpop.f32.mrb[0].mxu0
        %v472 = vadd.f32 0.0, %v471
        %v473 = vpop.f32.mrb[0].mxu0
        %474 = vdwg.mxu0
        %vm477 = vcmask 1046528
        %v478 = vrot.slane %v468, 1
        %v479 = vrot.slane %v472, 1
        %v480 = vsel %vm477, %v478, %v479
        %v482 = vadd.f32 %v470, %v480
        %v483 = vld [vmem:[%s228] sm:$0xff]
        %v484 = vmul.f32 %v482, %v483
        %485 = vst [vmem:[%s215] sm:$0xff] %v484
        %s486 = sand.u32 %s115, 1
        %s487 = scalar_lea.sflag [#allocation4], %s486
        %s488 = sand.u32 %s115, 1
        %s489 = smul.addr %s488, 8
        %s490 = scalar_lea.vmem [#allocation5], %s489
        // Predicated region
        $region37: #{tpu_custom_call.1} parent=31 // pred_check
          %p491 = pneg %p125
        $region38: #{tpu_custom_call.1} parent=31 // pred_check_branch
          %493 = sbr.rel (%p491) target = $region40
        $region39: #{tpu_custom_call.1} parent=31 // pred_region
          %s495 = ssub.s32 128, 128
          %496 = vsyncadd %s487, %s495
          %s497 = sadd.s32 %s23, %s22
          %s498 = smul.addr %s497, 128
          %s499 = scalar_lea.hbm %s3, %s498
          %s501 = sshll.u32 %s490, 4
          %s502 = int_to_ptr.vmem [resolvable:$true] %s501
          %504 = dma.vmem_to_hbm [thread:$0]  %s502, 128, %s499, %s487
        $region40: #{tpu_custom_call.1} parent=31 // pred_fallthru
          _
      $region32: #{tpu_custom_call.1} parent=5 // pred_fallthru
        _
      %p505 = scmp.le.s32.totalorder 2, %s13
      // Predicated region
      $region41: #{tpu_custom_call.1} parent=5 // pred_check
        %p506 = pneg %p505
      $region42: #{tpu_custom_call.1} parent=5 // pred_check_branch
        %508 = sbr.rel (%p506) target = $region44
      $region43: #{tpu_custom_call.1} parent=5 // pred_region
        %s509 = ssub.s32 %s13, 2
        // Predicated region
        $region45: #{tpu_custom_call.1} parent=43 // pred_check
          %p510 = pneg %p131
        $region46: #{tpu_custom_call.1} parent=43 // pred_check_branch
          %512 = sbr.rel (%p510) target = $region48
        $region47: #{tpu_custom_call.1} parent=43 // pred_region
          %s513 = sand.u32 %s116, 1
          %s514 = scalar_lea.sflag [#allocation4], %s513
          %s515 = sand.u32 %s116, 1
          %s516 = smul.addr %s515, 8
          %s517 = scalar_lea.vmem [#allocation5], %s516
          %518 = dma.done %s514, 128
        $region48: #{tpu_custom_call.1} parent=43 // pred_fallthru
          _
      $region44: #{tpu_custom_call.1} parent=5 // pred_fallthru
        _
    $region6: #{tpu_custom_call.1} parent=1 // loop_footer
      %s17 = sadd.s32 1, %s13
    $region7: #{tpu_custom_call.1} parent=1 // loop_footer_branch
      %12 = sbr.rel target = $region3
    $region8: #{tpu_custom_call.1} parent=1 // loop_exit
      _
    %519 = vsyncpa [#allocation3], 1
    %s520 = scalar_lea.sflag [#allocation3], 1
    %521 = vsyncpa %s520, 1
    %522 = vsyncpa [#allocation4], 1
    %s523 = scalar_lea.sflag [#allocation4], 1
    %524 = vsyncpa %s523, 1

</llo_original>
